<compile_context>
chip_gen: v5e
topology: v5e:2x2
jax: 0.10.0
libtpu: 0.0.40
codegen_flags: <defaults>
</compile_context>

<pallas_src>
from functools import partial

import jax
import jax.numpy as jnp
from jax.experimental import pallas as pl
from jax.experimental.pallas import tpu as pltpu

KERNEL_SIZE = 11
SIGMA = 1.5
DATA_RANGE = 2.0
K1, K2 = 0.01, 0.03
C1 = (K1 * DATA_RANGE) ** 2   # 0.0004
C2 = (K2 * DATA_RANGE) ** 2   # 0.0036
PAD = (KERNEL_SIZE - 1) // 2  # 5


def _gaussian_1d(kernel_size=KERNEL_SIZE, sigma=SIGMA):
    # Matches torchmetrics _gaussian: exp(-(d/sigma)^2 / 2), normalized.
    dist = jnp.arange(kernel_size, dtype=jnp.float32) - (kernel_size - 1) / 2.0
    g = jnp.exp(-((dist / sigma) ** 2) / 2.0)
    return g / jnp.sum(g)


def _fold_matrix(g, size, pad):
    """(size-2*pad, size) matrix == reflect-pad -> valid 1-D Gaussian -> crop.

    Reflect padding is a selection matrix, so it commutes with the elementwise
    products (x*x, y*y, x*y); folding pad+crop into the band matrix is exact.
    """
    k = g.shape[0]
    padded = size + 2 * pad
    # Valid-correlation band matrix on the padded axis: band[o, i] = g[i - o].
    o = jnp.arange(size)[:, None]
    i = jnp.arange(padded)[None, :]
    t = i - o
    band = jnp.where((t >= 0) & (t < k),
                     g[jnp.clip(t, 0, k - 1)],
                     jnp.float32(0.0)).astype(jnp.float32)
    # Reflect-pad selection matrix R[i, j] = 1 iff j == reflect(i - pad).
    ip = jnp.arange(padded) - pad
    refl = jnp.where(ip < 0, -ip,
                     jnp.where(ip >= size, 2 * (size - 1) - ip, ip))
    R = (jnp.arange(size)[None, :] == refl[:, None]).astype(jnp.float32)
    full = band @ R                      # (size, size): reflect-pad folded in
    return full[pad:size - pad, :]       # (size-2*pad, size): crop folded in


def _ssim_kernel(a_ref, b_ref, x_ref, y_ref, o_ref, *, H, Ho, Wo):
    A = a_ref[...]           # (Ho, H): height pass (pad + crop folded in)
    B = b_ref[...]           # (W, Wo): width pass  (pad + crop folded in)
    xc = x_ref[0, 0, :, :]   # (H, W)  one (sample, channel) per grid step
    yc = y_ref[0, 0, :, :]

    # Width pass: one wide MXU matmul over the 5 quantities stacked along rows.
    stacked = jnp.concatenate([xc, yc, xc * xc, yc * yc, xc * yc], axis=0)  # (5H, W)
    u = jnp.dot(stacked, B, preferred_element_type=jnp.float32)            # (5H, Wo)

    # Height pass: 5 dots sharing the same LHS A (row slices at multiples of H).
    mu_x = jnp.dot(A, u[0 * H:1 * H, :], preferred_element_type=jnp.float32)
    mu_y = jnp.dot(A, u[1 * H:2 * H, :], preferred_element_type=jnp.float32)
    mu_xx = jnp.dot(A, u[2 * H:3 * H, :], preferred_element_type=jnp.float32)
    mu_yy = jnp.dot(A, u[3 * H:4 * H, :], preferred_element_type=jnp.float32)
    mu_xy = jnp.dot(A, u[4 * H:5 * H, :], preferred_element_type=jnp.float32)

    mu_x_sq = mu_x * mu_x
    mu_y_sq = mu_y * mu_y
    mu_x_mu_y = mu_x * mu_y
    sigma_x = mu_xx - mu_x_sq            # no clamp: matches torchmetrics
    sigma_y = mu_yy - mu_y_sq
    sigma_xy = mu_xy - mu_x_mu_y

    num = (2.0 * mu_x_mu_y + C1) * (2.0 * sigma_xy + C2)
    den = (mu_x_sq + mu_y_sq + C1) * (sigma_x + sigma_y + C2)
    inv = pl.reciprocal(den, approx=True)      # EUP slot (otherwise idle here)
    inv = inv * (2.0 - den * inv)              # one Newton step -> f32 accuracy
    ssim_map = num * inv                       # (Ho, Wo), already cropped

    chan_mean = jnp.sum(ssim_map) * jnp.float32(1.0 / (Ho * Wo))
    o_ref[...] = jnp.full((1, 1, 8, 128), chan_mean, dtype=jnp.float32)


def ssim(x, y):
    """Per-sample SSIM, data_range=2.0, reduction='none'. Returns shape (N,)."""
    y = y.astype(x.dtype)                # match reference: gt.to(input.dtype)
    x = x.astype(jnp.float32)
    y = y.astype(jnp.float32)
    N, C, H, W = x.shape
    assert H > 2 * PAD and W > 2 * PAD, "SSIM needs H, W > 10 (11-tap Gaussian)"
    Ho, Wo = H - 2 * PAD, W - 2 * PAD

    g = _gaussian_1d()
    A = _fold_matrix(g, H, PAD)          # (Ho, H)
    B = _fold_matrix(g, W, PAD).T        # (W, Wo)

    # TODO(synk): for very large H/W, add an H-tile grid axis feeding only the
    # (tile_h, tile_h + 2*PAD) diagonal band of A instead of the dense matrix.
    kernel = partial(_ssim_kernel, H=H, Ho=Ho, Wo=Wo)
    out = pl.pallas_call(
        kernel,
        out_shape=jax.ShapeDtypeStruct((N, C, 8, 128), jnp.float32),
        grid=(N, C),
        in_specs=[
            pl.BlockSpec((Ho, H), lambda n, c: (0, 0)),
            pl.BlockSpec((W, Wo), lambda n, c: (0, 0)),
            pl.BlockSpec((1, 1, H, W), lambda n, c: (n, c, 0, 0)),
            pl.BlockSpec((1, 1, H, W), lambda n, c: (n, c, 0, 0)),
        ],
        out_specs=pl.BlockSpec((1, 1, 8, 128), lambda n, c: (n, c, 0, 0)),
        compiler_params=pltpu.CompilerParams(
            dimension_semantics=("parallel", "parallel"),
            vmem_limit_bytes=32 * 1024 * 1024),
    )(A, B, x, y)
    # Per-(sample, channel) means -> per-sample mean (equal counts per channel).
    return jnp.mean(out[:, :, 0, 0], axis=1)


if __name__ == "__main__":
    key = jax.random.PRNGKey(0)
    k1, k2 = jax.random.split(key)
    # data_range=2.0 -> values in [-1, 1]
    x = jax.random.uniform(k1, (2, 4, 16, 16), jnp.float32, -1.0, 1.0)
    y = jax.random.uniform(k2, (2, 4, 16, 16), jnp.float32, -1.0, 1.0)

    out = jax.block_until_ready(ssim(x, y))
    assert out.shape == (2,) and bool(jnp.all(jnp.isfinite(out)))
    print("KERNEL_OK")
</pallas_src>

<mosaic_0001>
module attributes {stable_mosaic.version = 11 : i64} {
  func.func @_ssim_kernel(%arg0: i32, %arg1: i32, %arg2: memref<6x16xf32, #tpu.memory_space<vmem>>, %arg3: memref<16x6xf32, #tpu.memory_space<vmem>>, %arg4: memref<1x1x16x16xf32, #tpu.memory_space<vmem>>, %arg5: memref<1x1x16x16xf32, #tpu.memory_space<vmem>>, %arg6: memref<1x1x8x128xf32, #tpu.memory_space<vmem>>) attributes {dimension_semantics = [#tpu.dimension_semantics<parallel>, #tpu.dimension_semantics<parallel>], iteration_bounds = array<i64: 2, 4>, scalar_prefetch = 0 : i64, scratch_operands = 0 : i64, tpu.core_type = #tpu.core_type<tc>, window_params = [{pipeline_mode = #tpu.pipeline_mode<synchronous>, transform_indices = @transform_0, window_bounds = array<i64: 6, 16>}, {pipeline_mode = #tpu.pipeline_mode<synchronous>, transform_indices = @transform_1, window_bounds = array<i64: 16, 6>}, {transform_indices = @transform_2, window_bounds = array<i64: 1, 1, 16, 16>}, {transform_indices = @transform_3, window_bounds = array<i64: 1, 1, 16, 16>}, {transform_indices = @transform_4, window_bounds = array<i64: 1, 1, 8, 128>}]} {
    %c0 = arith.constant 0 : index
    %c0_0 = arith.constant 0 : index
    %0 = vector.load %arg2[%c0, %c0_0] : memref<6x16xf32, #tpu.memory_space<vmem>>, vector<6x16xf32>
    %c0_1 = arith.constant 0 : index
    %c0_2 = arith.constant 0 : index
    %1 = vector.load %arg3[%c0_1, %c0_2] : memref<16x6xf32, #tpu.memory_space<vmem>>, vector<16x6xf32>
    %c0_3 = arith.constant 0 : index
    %c0_4 = arith.constant 0 : index
    %c0_5 = arith.constant 0 : index
    %c0_6 = arith.constant 0 : index
    %2 = vector.load %arg4[%c0_3, %c0_4, %c0_5, %c0_6] : memref<1x1x16x16xf32, #tpu.memory_space<vmem>>, vector<1x1x16x16xf32>
    %3 = vector.shape_cast %2 : vector<1x1x16x16xf32> to vector<16x16xf32>
    %c0_7 = arith.constant 0 : index
    %c0_8 = arith.constant 0 : index
    %c0_9 = arith.constant 0 : index
    %c0_10 = arith.constant 0 : index
    %4 = vector.load %arg5[%c0_7, %c0_8, %c0_9, %c0_10] : memref<1x1x16x16xf32, #tpu.memory_space<vmem>>, vector<1x1x16x16xf32>
    %5 = vector.shape_cast %4 : vector<1x1x16x16xf32> to vector<16x16xf32>
    %6 = arith.mulf %3, %3 : vector<16x16xf32>
    %7 = arith.mulf %5, %5 : vector<16x16xf32>
    %8 = arith.mulf %3, %5 : vector<16x16xf32>
    %9 = tpu.concatenate %3, %5, %6, %7, %8 in 0 : vector<16x16xf32>, vector<16x16xf32>, vector<16x16xf32>, vector<16x16xf32>, vector<16x16xf32> -> vector<80x16xf32>
    %cst = arith.constant dense<0.000000e+00> : vector<80x6xf32>
    %10 = tpu.matmul %9, %1, %cst {dimension_numbers = #tpu.dot_dimension_numbers<[1], [0], [0], [1], [0, 0, 1, 1], [], []>} : vector<80x16xf32>, vector<16x6xf32>, vector<80x6xf32> -> vector<80x6xf32>
    %11 = vector.extract_strided_slice %10 {offsets = [0, 0], sizes = [16, 6], strides = [1, 1]} : vector<80x6xf32> to vector<16x6xf32>
    %cst_11 = arith.constant dense<0.000000e+00> : vector<6x6xf32>
    %12 = tpu.matmul %0, %11, %cst_11 {dimension_numbers = #tpu.dot_dimension_numbers<[1], [0], [0], [1], [0, 0, 1, 1], [], []>} : vector<6x16xf32>, vector<16x6xf32>, vector<6x6xf32> -> vector<6x6xf32>
    %13 = vector.extract_strided_slice %10 {offsets = [16, 0], sizes = [16, 6], strides = [1, 1]} : vector<80x6xf32> to vector<16x6xf32>
    %cst_12 = arith.constant dense<0.000000e+00> : vector<6x6xf32>
    %14 = tpu.matmul %0, %13, %cst_12 {dimension_numbers = #tpu.dot_dimension_numbers<[1], [0], [0], [1], [0, 0, 1, 1], [], []>} : vector<6x16xf32>, vector<16x6xf32>, vector<6x6xf32> -> vector<6x6xf32>
    %15 = vector.extract_strided_slice %10 {offsets = [32, 0], sizes = [16, 6], strides = [1, 1]} : vector<80x6xf32> to vector<16x6xf32>
    %cst_13 = arith.constant dense<0.000000e+00> : vector<6x6xf32>
    %16 = tpu.matmul %0, %15, %cst_13 {dimension_numbers = #tpu.dot_dimension_numbers<[1], [0], [0], [1], [0, 0, 1, 1], [], []>} : vector<6x16xf32>, vector<16x6xf32>, vector<6x6xf32> -> vector<6x6xf32>
    %17 = vector.extract_strided_slice %10 {offsets = [48, 0], sizes = [16, 6], strides = [1, 1]} : vector<80x6xf32> to vector<16x6xf32>
    %cst_14 = arith.constant dense<0.000000e+00> : vector<6x6xf32>
    %18 = tpu.matmul %0, %17, %cst_14 {dimension_numbers = #tpu.dot_dimension_numbers<[1], [0], [0], [1], [0, 0, 1, 1], [], []>} : vector<6x16xf32>, vector<16x6xf32>, vector<6x6xf32> -> vector<6x6xf32>
    %19 = vector.extract_strided_slice %10 {offsets = [64, 0], sizes = [16, 6], strides = [1, 1]} : vector<80x6xf32> to vector<16x6xf32>
    %cst_15 = arith.constant dense<0.000000e+00> : vector<6x6xf32>
    %20 = tpu.matmul %0, %19, %cst_15 {dimension_numbers = #tpu.dot_dimension_numbers<[1], [0], [0], [1], [0, 0, 1, 1], [], []>} : vector<6x16xf32>, vector<16x6xf32>, vector<6x6xf32> -> vector<6x6xf32>
    %21 = arith.mulf %12, %12 : vector<6x6xf32>
    %22 = arith.mulf %14, %14 : vector<6x6xf32>
    %23 = arith.mulf %12, %14 : vector<6x6xf32>
    %24 = arith.subf %16, %21 : vector<6x6xf32>
    %25 = arith.subf %18, %22 : vector<6x6xf32>
    %26 = arith.subf %20, %23 : vector<6x6xf32>
    %cst_16 = arith.constant 2.000000e+00 : f32
    %27 = vector.broadcast %cst_16 : f32 to vector<6x6xf32>
    %28 = arith.mulf %27, %23 : vector<6x6xf32>
    %cst_17 = arith.constant 4.000000e-04 : f32
    %29 = vector.broadcast %cst_17 : f32 to vector<6x6xf32>
    %30 = arith.addf %28, %29 : vector<6x6xf32>
    %cst_18 = arith.constant 2.000000e+00 : f32
    %31 = vector.broadcast %cst_18 : f32 to vector<6x6xf32>
    %32 = arith.mulf %31, %26 : vector<6x6xf32>
    %cst_19 = arith.constant 3.600000e-03 : f32
    %33 = vector.broadcast %cst_19 : f32 to vector<6x6xf32>
    %34 = arith.addf %32, %33 : vector<6x6xf32>
    %35 = arith.mulf %30, %34 : vector<6x6xf32>
    %36 = arith.addf %21, %22 : vector<6x6xf32>
    %cst_20 = arith.constant 4.000000e-04 : f32
    %37 = vector.broadcast %cst_20 : f32 to vector<6x6xf32>
    %38 = arith.addf %36, %37 : vector<6x6xf32>
    %39 = arith.addf %24, %25 : vector<6x6xf32>
    %cst_21 = arith.constant 3.600000e-03 : f32
    %40 = vector.broadcast %cst_21 : f32 to vector<6x6xf32>
    %41 = arith.addf %39, %40 : vector<6x6xf32>
    %42 = arith.mulf %38, %41 : vector<6x6xf32>
    %43 = tpu.reciprocal %42 {approx = true} : vector<6x6xf32> -> vector<6x6xf32>
    %44 = arith.mulf %42, %43 : vector<6x6xf32>
    %cst_22 = arith.constant 2.000000e+00 : f32
    %45 = vector.broadcast %cst_22 : f32 to vector<6x6xf32>
    %46 = arith.subf %45, %44 : vector<6x6xf32>
    %47 = arith.mulf %43, %46 : vector<6x6xf32>
    %48 = arith.mulf %35, %47 : vector<6x6xf32>
    %49 = vector.shape_cast %48 : vector<6x6xf32> to vector<1x6x6xf32>
    %cst_23 = arith.constant dense<0.000000e+00> : vector<1xf32>
    %50 = vector.multi_reduction <add>, %49, %cst_23 [1, 2] : vector<1x6x6xf32> to vector<1xf32>
    %51 = vector.shape_cast %50 : vector<1xf32> to vector<1x1x1xf32>
    %52 = vector.extract %51[0, 0, 0] : f32 from vector<1x1x1xf32>
    %cst_24 = arith.constant 0.027777778 : f32
    %53 = arith.mulf %52, %cst_24 : f32
    %54 = vector.broadcast %53 : f32 to vector<1x1x8x128xf32>
    %c0_25 = arith.constant 0 : index
    %c0_26 = arith.constant 0 : index
    %c0_27 = arith.constant 0 : index
    %c0_28 = arith.constant 0 : index
    %55 = vector.load %arg6[%c0_25, %c0_26, %c0_27, %c0_28] : memref<1x1x8x128xf32, #tpu.memory_space<vmem>>, vector<1x1x8x128xf32>
    tpu.vector_store %arg6[%c0_25, %c0_26, %c0_27, %c0_28], %54 {strides = array<i32>} : memref<1x1x8x128xf32, #tpu.memory_space<vmem>>, vector<1x1x8x128xf32>,
    return
  }
  func.func @transform_0(%arg0: i32, %arg1: i32) -> (i32, i32) {
    %c0_i32 = arith.constant 0 : i32
    %c0_i32_0 = arith.constant 0 : i32
    %c0_i32_1 = arith.constant 0 : i32
    return %c0_i32, %c0_i32_0 : i32, i32
  }
  func.func @transform_1(%arg0: i32, %arg1: i32) -> (i32, i32) {
    %c0_i32 = arith.constant 0 : i32
    %c0_i32_0 = arith.constant 0 : i32
    %c0_i32_1 = arith.constant 0 : i32
    return %c0_i32, %c0_i32_0 : i32, i32
  }
  func.func @transform_2(%arg0: i32, %arg1: i32) -> (i32, i32, i32, i32) {
    %c0_i32 = arith.constant 0 : i32
    %c0_i32_0 = arith.constant 0 : i32
    %c0_i32_1 = arith.constant 0 : i32
    return %arg0, %arg1, %c0_i32, %c0_i32_0 : i32, i32, i32, i32
  }
  func.func @transform_3(%arg0: i32, %arg1: i32) -> (i32, i32, i32, i32) {
    %c0_i32 = arith.constant 0 : i32
    %c0_i32_0 = arith.constant 0 : i32
    %c0_i32_1 = arith.constant 0 : i32
    return %arg0, %arg1, %c0_i32, %c0_i32_0 : i32, i32, i32, i32
  }
  func.func @transform_4(%arg0: i32, %arg1: i32) -> (i32, i32, i32, i32) {
    %c0_i32 = arith.constant 0 : i32
    %c0_i32_0 = arith.constant 0 : i32
    %c0_i32_1 = arith.constant 0 : i32
    return %arg0, %arg1, %c0_i32, %c0_i32_0 : i32, i32, i32, i32
  }
}

</mosaic_0001>

<llo_original>
// kernel: tpu_custom_call.1
$region0: #{tpu_custom_call.1}
  #allocation0 [shape = 'u32[]', space=smem, size = 0x4, offset = 0x4, fixed_abs, tag = 'smem constant byte address 0x4 - core index']
  #allocation1 [shape = 'u32[72,128]{1,0:T(1,128)}', space=vmem, size = 0x9000, scoped, tag = 'internal scratch']
  %s0 = inlined_call_operand.vmem [shape: f32[6,16], index: 0, kind: input, shape index: {}]
  %s1 = inlined_call_operand.vmem [shape: f32[16,6], index: 1, kind: input, shape index: {}]
  %s2 = inlined_call_operand.hbm [shape: f32[2,4,16,16], index: 2, kind: input, shape index: {}]
  %s3 = inlined_call_operand.hbm [shape: f32[2,4,16,16], index: 3, kind: input, shape index: {}]
  %s4 = inlined_call_operand.hbm [shape: f32[2,4,8,128], index: 4, kind: output, shape index: {}]
  %s5 = sld [smem:[#allocation0]]
  $region57: #{tpu_custom_call.1} parent=0
    _
  %s7 = ssub.s32 1, %s5
  %s8 = scalar_select 0, %s7, %s5
  $region1: #{tpu_custom_call.1} parent=0
    #allocation2 [shape = 'u8[16384]{0}', space=vmem, size = 0x4000, scoped, tag = 'input window, operand 2']
    #allocation3 [shape = 's32[2]{0}', space=sflag, size = 0x8, scoped, tag = 'scoped memory for tpu_custom_call.1']
    #allocation4 [shape = 's32[2]{0}', space=sflag, size = 0x8, scoped, tag = 'scoped memory for tpu_custom_call.1']
    #allocation5 [shape = 'u8[16384]{0}', space=vmem, size = 0x4000, scoped, tag = 'input window, operand 3']
    #allocation6 [shape = 's32[2]{0}', space=sflag, size = 0x8, scoped, tag = 'scoped memory for tpu_custom_call.1']
    #allocation7 [shape = 'u8[8192]{0}', space=vmem, size = 0x2000, scoped, tag = 'output window, operand 0']
    %9 = vsyncpa [#allocation3], 0
    %s10 = scalar_lea.sflag [#allocation3], 1
    %11 = vsyncpa %s10, 0
    %12 = vsyncpa [#allocation6], 0
    %s13 = scalar_lea.sflag [#allocation6], 1
    %14 = vsyncpa %s13, 0
    %15 = vsyncpa [#allocation4], 0
    %s16 = scalar_lea.sflag [#allocation4], 1
    %17 = vsyncpa %s16, 0
    loop: start=0, step=1, limit=10
    $region2: #{tpu_custom_call.1} parent=1 // loop_pre_header
      _
    $region3: #{tpu_custom_call.1} parent=1 // loop_header
      %s19 = sphi 0, %s23
      %p20 = scmp.ge.s32.totalorder %s19, 10
      %s26 = sphi 0, %s38
      %s27 = sphi 0, %s34
      %s28 = sphi 0, %s26
      %s29 = sphi 0, %s27
      %s30 = sphi 0, %s28
      %s31 = sphi 0, %s29
      %s39 = sphi 0, %s39
      %s41 = sphi 0, %s39
      %s42 = sphi 0, %s41
      %s56 = sphi 0, %s42
      %s60 = sphi 0, %s60
      %s62 = sphi 0, %s60
      %s63 = sphi 0, %s62
      %s77 = sphi 0, %s63
      %s85 = sphi 0, %s87
      %s88 = sphi 0, %s85
      %s89 = sphi 0, %s88
      %s105 = sphi 0, %s89
      %s113 = sphi 0, %s115
      %s116 = sphi 0, %s113
      %s117 = sphi 0, %s116
      %s133 = sphi 0, %s117
      %s141 = sphi 0, %s143
      %s144 = sphi 0, %s141
      %s145 = sphi 0, %s144
      %s161 = sphi 0, %s145
    $region4: #{tpu_custom_call.1} parent=1 // loop_header_branch
      %22 = sbr.rel (%p20) target = $region8
    $region5: #{tpu_custom_call.1} parent=1 // loop_body
      %s24 = ssub.s32 %s19, 1
      %s25 = ssub.s32 %s19, 2
      %s32 = sadd.s32 1, %s27
      %p33 = scmp.ge.s32.totalorder %s32, 4
      %s34 = scalar_select %p33, 0, %s32
      %s35 = sadd.s32 1, %s26
      %s36 = scalar_select %p33, %s35, %s26
      %p37 = scmp.ge.s32.totalorder %s36, 2
      %s38 = scalar_select %p37, 0, %s36
      %s40 = sadd.s32 %s39, 1
      %p43 = scmp.eq.s32.totalorder %s19, 7
      %p44 = scmp.ne.s32.totalorder %s39, %s41
      %p45 = scmp.eq.s32.totalorder %s19, 0
      %p46 = por %p44, %p45
      %p47 = scmp.ne.s32.totalorder %s39, %s41
      %p48 = scmp.eq.s32.totalorder %s24, 7
      %p49 = por %p47, %p48
      %p50 = scmp.ne.s32.totalorder %s41, %s42
      %p51 = scmp.eq.s32.totalorder %s24, 0
      %p52 = por %p50, %p51
      %p53 = scmp.ne.s32.totalorder %s41, %s42
      %p54 = scmp.eq.s32.totalorder %s25, 7
      %p55 = por %p53, %p54
      %p57 = scmp.ne.s32.totalorder %s42, %s56
      %p58 = scmp.eq.s32.totalorder %s25, 0
      %p59 = por %p57, %p58
      %s61 = sadd.s32 %s60, 1
      %p64 = scmp.eq.s32.totalorder %s19, 7
      %p65 = scmp.ne.s32.totalorder %s60, %s62
      %p66 = scmp.eq.s32.totalorder %s19, 0
      %p67 = por %p65, %p66
      %p68 = scmp.ne.s32.totalorder %s60, %s62
      %p69 = scmp.eq.s32.totalorder %s24, 7
      %p70 = por %p68, %p69
      %p71 = scmp.ne.s32.totalorder %s62, %s63
      %p72 = scmp.eq.s32.totalorder %s24, 0
      %p73 = por %p71, %p72
      %p74 = scmp.ne.s32.totalorder %s62, %s63
      %p75 = scmp.eq.s32.totalorder %s25, 7
      %p76 = por %p74, %p75
      %p78 = scmp.ne.s32.totalorder %s63, %s77
      %p79 = scmp.eq.s32.totalorder %s25, 0
      %p80 = por %p78, %p79
      %s81 = ssub.s32 %s26, %s38
      %s82 = ssub.s32 %s27, %s34
      %s83 = sor.u32 %s81, %s82
      %p84 = scmp.eq.s32.totalorder %s83, 0
      %s86 = sadd.s32 %s85, 1
      %s87 = scalar_select %p84, %s85, %s86
      %p90 = pneg %p84
      %p91 = scmp.eq.s32.totalorder %s19, 7
      %p92 = por %p90, %p91
      %p93 = scmp.ne.s32.totalorder %s85, %s88
      %p94 = scmp.eq.s32.totalorder %s19, 0
      %p95 = por %p93, %p94
      %p96 = scmp.ne.s32.totalorder %s85, %s88
      %p97 = scmp.eq.s32.totalorder %s24, 7
      %p98 = por %p96, %p97
      %p99 = scmp.ne.s32.totalorder %s88, %s89
      %p100 = scmp.eq.s32.totalorder %s24, 0
      %p101 = por %p99, %p100
      %p102 = scmp.ne.s32.totalorder %s88, %s89
      %p103 = scmp.eq.s32.totalorder %s25, 7
      %p104 = por %p102, %p103
      %p106 = scmp.ne.s32.totalorder %s89, %s105
      %p107 = scmp.eq.s32.totalorder %s25, 0
      %p108 = por %p106, %p107
      %s109 = ssub.s32 %s26, %s38
      %s110 = ssub.s32 %s27, %s34
      %s111 = sor.u32 %s109, %s110
      %p112 = scmp.eq.s32.totalorder %s111, 0
      %s114 = sadd.s32 %s113, 1
      %s115 = scalar_select %p112, %s113, %s114
      %p118 = pneg %p112
      %p119 = scmp.eq.s32.totalorder %s19, 7
      %p120 = por %p118, %p119
      %p121 = scmp.ne.s32.totalorder %s113, %s116
      %p122 = scmp.eq.s32.totalorder %s19, 0
      %p123 = por %p121, %p122
      %p124 = scmp.ne.s32.totalorder %s113, %s116
      %p125 = scmp.eq.s32.totalorder %s24, 7
      %p126 = por %p124, %p125
      %p127 = scmp.ne.s32.totalorder %s116, %s117
      %p128 = scmp.eq.s32.totalorder %s24, 0
      %p129 = por %p127, %p128
      %p130 = scmp.ne.s32.totalorder %s116, %s117
      %p131 = scmp.eq.s32.totalorder %s25, 7
      %p132 = por %p130, %p131
      %p134 = scmp.ne.s32.totalorder %s117, %s133
      %p135 = scmp.eq.s32.totalorder %s25, 0
      %p136 = por %p134, %p135
      %s137 = ssub.s32 %s26, %s38
      %s138 = ssub.s32 %s27, %s34
      %s139 = sor.u32 %s137, %s138
      %p140 = scmp.eq.s32.totalorder %s139, 0
      %s142 = sadd.s32 %s141, 1
      %s143 = scalar_select %p140, %s141, %s142
      %p146 = pneg %p140
      %p147 = scmp.eq.s32.totalorder %s19, 7
      %p148 = por %p146, %p147
      %p149 = scmp.ne.s32.totalorder %s141, %s144
      %p150 = scmp.eq.s32.totalorder %s19, 0
      %p151 = por %p149, %p150
      %p152 = scmp.ne.s32.totalorder %s141, %s144
      %p153 = scmp.eq.s32.totalorder %s24, 7
      %p154 = por %p152, %p153
      %p155 = scmp.ne.s32.totalorder %s144, %s145
      %p156 = scmp.eq.s32.totalorder %s24, 0
      %p157 = por %p155, %p156
      %p158 = scmp.ne.s32.totalorder %s144, %s145
      %p159 = scmp.eq.s32.totalorder %s25, 7
      %p160 = por %p158, %p159
      %p162 = scmp.ne.s32.totalorder %s145, %s161
      %p163 = scmp.eq.s32.totalorder %s25, 0
      %p164 = por %p162, %p163
      %p165 = scmp.le.s32.totalorder 1, %s19
      %p166 = scmp.lt.s32.totalorder %s19, 9
      %p167 = pnand %p165, %p166
      %p168 = pneg %p167
      // Predicated region
      $region9: #{tpu_custom_call.1} parent=5 // pred_check
        _
      $region10: #{tpu_custom_call.1} parent=5 // pred_check_branch
        %170 = sbr.rel (%p167) target = $region12
      $region11: #{tpu_custom_call.1} parent=5 // pred_region
        %s171 = ssub.s32 %s19, 1
        // Predicated region
        $region13: #{tpu_custom_call.1} parent=11 // pred_check
          %p172 = pneg %p52
        $region14: #{tpu_custom_call.1} parent=11 // pred_check_branch
          %174 = sbr.rel (%p172) target = $region16
        $region15: #{tpu_custom_call.1} parent=11 // pred_region
          _
        $region16: #{tpu_custom_call.1} parent=11 // pred_fallthru
          _
        // Predicated region
        $region17: #{tpu_custom_call.1} parent=11 // pred_check
          %p175 = pneg %p73
        $region18: #{tpu_custom_call.1} parent=11 // pred_check_branch
          %177 = sbr.rel (%p175) target = $region20
        $region19: #{tpu_custom_call.1} parent=11 // pred_region
          _
        $region20: #{tpu_custom_call.1} parent=11 // pred_fallthru
          _
      $region12: #{tpu_custom_call.1} parent=5 // pred_fallthru
        _
      %p178 = scmp.lt.s32.totalorder %s19, 8
      // Predicated region
      $region21: #{tpu_custom_call.1} parent=5 // pred_check
        %p179 = pneg %p178
      $region22: #{tpu_custom_call.1} parent=5 // pred_check_branch
        %181 = sbr.rel (%p179) target = $region24
      $region23: #{tpu_custom_call.1} parent=5 // pred_region
        // Predicated region
        $region25: #{tpu_custom_call.1} parent=23 // pred_check
          %p182 = pneg %p95
        $region26: #{tpu_custom_call.1} parent=23 // pred_check_branch
          %184 = sbr.rel (%p182) target = $region28
        $region27: #{tpu_custom_call.1} parent=23 // pred_region
          %s185 = sand.u32 %s85, 1
          %s186 = scalar_lea.sflag [#allocation3], %s185
          %s187 = sand.u32 %s85, 1
          %s188 = smul.addr %s187, 16
          %s189 = scalar_lea.vmem [#allocation2], %s188
          %191 = vsyncadd %s186, 0
          %s192 = smul.addr %s27, 2
          %s193 = smul.addr %s26, 8
          %s194 = sadd.s32 %s192, %s193
          %s195 = smul.addr %s194, 8
          %s196 = scalar_lea.hbm %s2, %s195
          %s197 = sshll.u32 %s196, 4
          %s198 = int_to_ptr.hbm [resolvable:$true] %s197
          %s199 = sshll.u32 %s189, 4
          %s200 = int_to_ptr.vmem [resolvable:$true] %s199
          %205 = dma.hbm_to_vmem [thread:$0]  %s198, 256, %s200, %s186, 128, 128, 8
        $region28: #{tpu_custom_call.1} parent=23 // pred_fallthru
          _
        // Predicated region
        $region29: #{tpu_custom_call.1} parent=23 // pred_check
          %p206 = pneg %p123
        $region30: #{tpu_custom_call.1} parent=23 // pred_check_branch
          %208 = sbr.rel (%p206) target = $region32
        $region31: #{tpu_custom_call.1} parent=23 // pred_region
          %s209 = sand.u32 %s113, 1
          %s210 = scalar_lea.sflag [#allocation6], %s209
          %s211 = sand.u32 %s113, 1
          %s212 = smul.addr %s211, 16
          %s213 = scalar_lea.vmem [#allocation5], %s212
          %215 = vsyncadd %s210, 0
          %s216 = smul.addr %s27, 2
          %s217 = smul.addr %s26, 8
          %s218 = sadd.s32 %s216, %s217
          %s219 = smul.addr %s218, 8
          %s220 = scalar_lea.hbm %s3, %s219
          %s221 = sshll.u32 %s220, 4
          %s222 = int_to_ptr.hbm [resolvable:$true] %s221
          %s223 = sshll.u32 %s213, 4
          %s224 = int_to_ptr.vmem [resolvable:$true] %s223
          %229 = dma.hbm_to_vmem [thread:$0]  %s222, 256, %s224, %s210, 128, 128, 8
        $region32: #{tpu_custom_call.1} parent=23 // pred_fallthru
          _
      $region24: #{tpu_custom_call.1} parent=5 // pred_fallthru
        _
      %p230 = scmp.le.s32.totalorder 1, %s19
      %p231 = scmp.lt.s32.totalorder %s19, 9
      %p232 = pnand %p230, %p231
      %p233 = pneg %p232
      // Predicated region
      $region33: #{tpu_custom_call.1} parent=5 // pred_check
        _
      $region34: #{tpu_custom_call.1} parent=5 // pred_check_branch
        %235 = sbr.rel (%p232) target = $region36
      $region35: #{tpu_custom_call.1} parent=5 // pred_region
        %s236 = ssub.s32 %s19, 1
        %s237 = sand.u32 %s88, 1
        %s238 = scalar_lea.sflag [#allocation3], %s237
        %s239 = sand.u32 %s88, 1
        %s240 = smul.addr %s239, 16
        %s241 = scalar_lea.vmem [#allocation2], %s240
        // Predicated region
        $region37: #{tpu_custom_call.1} parent=35 // pred_check
          %p242 = pneg %p101
        $region38: #{tpu_custom_call.1} parent=35 // pred_check_branch
          %244 = sbr.rel (%p242) target = $region40
        $region39: #{tpu_custom_call.1} parent=35 // pred_region
          %246 = dma.done %s238, 256
        $region40: #{tpu_custom_call.1} parent=35 // pred_fallthru
          _
        %s247 = sand.u32 %s116, 1
        %s248 = scalar_lea.sflag [#allocation6], %s247
        %s249 = sand.u32 %s116, 1
        %s250 = smul.addr %s249, 16
        %s251 = scalar_lea.vmem [#allocation5], %s250
        // Predicated region
        $region41: #{tpu_custom_call.1} parent=35 // pred_check
          %p252 = pneg %p129
        $region42: #{tpu_custom_call.1} parent=35 // pred_check_branch
          %254 = sbr.rel (%p252) target = $region44
        $region43: #{tpu_custom_call.1} parent=35 // pred_region
          %256 = dma.done %s248, 256
        $region44: #{tpu_custom_call.1} parent=35 // pred_fallthru
          _
        %p257 = pneg %p52
        %p258 = pneg %p49
        %p259 = pneg %p73
        %p260 = pneg %p70
        %s261 = sand.u32 %s88, 1
        %s262 = scalar_lea.sflag [#allocation3], %s261
        %s263 = sand.u32 %s88, 1
        %s264 = smul.addr %s263, 16
        %s265 = scalar_lea.vmem [#allocation2], %s264
        %p266 = pneg %p101
        %p267 = pneg %p98
        %s268 = sand.u32 %s116, 1
        %s269 = scalar_lea.sflag [#allocation6], %s268
        %s270 = sand.u32 %s116, 1
        %s271 = smul.addr %s270, 16
        %s272 = scalar_lea.vmem [#allocation5], %s271
        %p273 = pneg %p129
        %p274 = pneg %p126
        %p275 = pneg %p157
        %p276 = pneg %p154
        %s277 = sand.u32 %s144, 1
        %s278 = scalar_lea.sflag [#allocation4], %s277
        %s279 = sand.u32 %s144, 1
        %s280 = smul.addr %s279, 8
        %s281 = scalar_lea.vmem [#allocation7], %s280
        %v282 = vld [vmem:[%s0] sm:$0x3f]
        %v283 = vld [vmem:[%s1] sm:$0xff]
        %v284 = vld [vmem:[%s1 + $0x8] sm:$0xff]
        %v285 = vld [vmem:[%s241] sm:$0xff]
        %v286 = vld [vmem:[%s241 + $0x8] sm:$0xff]
        %v287 = vld [vmem:[%s251] sm:$0xff]
        %v288 = vld [vmem:[%s251 + $0x8] sm:$0xff]
        %v289 = vmul.f32 %v285, %v285
        %v290 = vmul.f32 %v286, %v286
        %v291 = vmul.f32 %v287, %v287
        %v292 = vmul.f32 %v288, %v288
        %v293 = vmul.f32 %v285, %v287
        %v294 = vmul.f32 %v286, %v288
        %vm295 = vcmask 130048
        %v297 = vsel %vm295, %v285, 0
        %v300 = vsel %vm295, %v286, 0
        %v303 = vsel %vm295, %v287, 0
        %v306 = vsel %vm295, %v288, 0
        %v309 = vsel %vm295, %v289, 0
        %v312 = vsel %vm295, %v290, 0
        %v315 = vsel %vm295, %v291, 0
        %v318 = vsel %vm295, %v292, 0
        %v321 = vsel %vm295, %v293, 0
        %v324 = vsel %vm295, %v294, 0
        %326 = vmatpush.msra.mxu0 0.0
        %327 = vmatpush.msra.mxu0 0.0
        %328 = vmatpush.msra.mxu0 0.0
        %329 = vmatpush.msra.mxu0 0.0
        %330 = vmatpush.msra.mxu0 0.0
        %331 = vmatpush.msra.mxu0 0.0
        %332 = vmatpush.msra.mxu0 0.0
        %333 = vmatpush.msra.mxu0 0.0
        %334 = vmatpush.msra.mxu0 0.0
        %335 = vmatpush.msra.mxu0 0.0
        %336 = vmatpush.msra.mxu0 0.0
        %337 = vmatpush.msra.mxu0 0.0
        %338 = vmatpush.msra.mxu0 0.0
        %339 = vmatpush.msra.mxu0 0.0
        %340 = vmatpush.msra.mxu0 %v284
        %341 = vmatpush.msra.mxu0 %v283
        %342 = vmatmul.f32.gmra.mxu0 %v297
        %v343 = vpop.f32.mrf.mxu0
        %v344 = vadd.f32 0.0, %v343
        %345 = vmatmul.f32.gmra.mxu0 %v300
        %v346 = vpop.f32.mrf.mxu0
        %v347 = vadd.f32 0.0, %v346
        %348 = vmatmul.f32.gmra.mxu0 %v303
        %v349 = vpop.f32.mrf.mxu0
        %v350 = vadd.f32 0.0, %v349
        %351 = vmatmul.f32.gmra.mxu0 %v306
        %v352 = vpop.f32.mrf.mxu0
        %v353 = vadd.f32 0.0, %v352
        %354 = vmatmul.f32.gmra.mxu0 %v309
        %v355 = vpop.f32.mrf.mxu0
        %v356 = vadd.f32 0.0, %v355
        %357 = vmatmul.f32.gmra.mxu0 %v312
        %v358 = vpop.f32.mrf.mxu0
        %v359 = vadd.f32 0.0, %v358
        %360 = vmatmul.f32.gmra.mxu0 %v315
        %v361 = vpop.f32.mrf.mxu0
        %v362 = vadd.f32 0.0, %v361
        %363 = vmatmul.f32.gmra.mxu0 %v318
        %v364 = vpop.f32.mrf.mxu0
        %v365 = vadd.f32 0.0, %v364
        %366 = vmatmul.f32.gmra.mxu0 %v321
        %v367 = vpop.f32.mrf.mxu0
        %v368 = vadd.f32 0.0, %v367
        %369 = vmatmul.f32.gmra.mxu0 %v324
        %v370 = vpop.f32.mrf.mxu0
        %v371 = vadd.f32 0.0, %v370
        %372 = vdwg.mxu0
        %v374 = vsel %vm295, %v282, 0
        %376 = vmatpush.msra.mxu0 0.0
        %377 = vmatpush.msra.mxu0 0.0
        %378 = vmatpush.msra.mxu0 0.0
        %379 = vmatpush.msra.mxu0 0.0
        %380 = vmatpush.msra.mxu0 0.0
        %381 = vmatpush.msra.mxu0 0.0
        %382 = vmatpush.msra.mxu0 0.0
        %383 = vmatpush.msra.mxu0 0.0
        %384 = vmatpush.msra.mxu0 0.0
        %385 = vmatpush.msra.mxu0 0.0
        %386 = vmatpush.msra.mxu0 0.0
        %387 = vmatpush.msra.mxu0 0.0
        %388 = vmatpush.msra.mxu0 0.0
        %389 = vmatpush.msra.mxu0 0.0
        %390 = vmatpush.msra.mxu0 %v347
        %391 = vmatpush.msra.mxu0 %v344
        %392 = vmatmul.f32.gmra.mxu0 %v374
        %v393 = vpop.f32.mrf.mxu0
        %v394 = vadd.f32 0.0, %v393
        %395 = vdwg.mxu0
        %396 = vmatpush.msra.mxu0 0.0
        %397 = vmatpush.msra.mxu0 0.0
        %398 = vmatpush.msra.mxu0 0.0
        %399 = vmatpush.msra.mxu0 0.0
        %400 = vmatpush.msra.mxu0 0.0
        %401 = vmatpush.msra.mxu0 0.0
        %402 = vmatpush.msra.mxu0 0.0
        %403 = vmatpush.msra.mxu0 0.0
        %404 = vmatpush.msra.mxu0 0.0
        %405 = vmatpush.msra.mxu0 0.0
        %406 = vmatpush.msra.mxu0 0.0
        %407 = vmatpush.msra.mxu0 0.0
        %408 = vmatpush.msra.mxu0 0.0
        %409 = vmatpush.msra.mxu0 0.0
        %410 = vmatpush.msra.mxu0 %v353
        %411 = vmatpush.msra.mxu0 %v350
        %412 = vmatmul.f32.gmra.mxu0 %v374
        %v413 = vpop.f32.mrf.mxu0
        %v414 = vadd.f32 0.0, %v413
        %415 = vdwg.mxu0
        %416 = vmatpush.msra.mxu0 0.0
        %417 = vmatpush.msra.mxu0 0.0
        %418 = vmatpush.msra.mxu0 0.0
        %419 = vmatpush.msra.mxu0 0.0
        %420 = vmatpush.msra.mxu0 0.0
        %421 = vmatpush.msra.mxu0 0.0
        %422 = vmatpush.msra.mxu0 0.0
        %423 = vmatpush.msra.mxu0 0.0
        %424 = vmatpush.msra.mxu0 0.0
        %425 = vmatpush.msra.mxu0 0.0
        %426 = vmatpush.msra.mxu0 0.0
        %427 = vmatpush.msra.mxu0 0.0
        %428 = vmatpush.msra.mxu0 0.0
        %429 = vmatpush.msra.mxu0 0.0
        %430 = vmatpush.msra.mxu0 %v359
        %431 = vmatpush.msra.mxu0 %v356
        %432 = vmatmul.f32.gmra.mxu0 %v374
        %v433 = vpop.f32.mrf.mxu0
        %v434 = vadd.f32 0.0, %v433
        %435 = vdwg.mxu0
        %436 = vmatpush.msra.mxu0 0.0
        %437 = vmatpush.msra.mxu0 0.0
        %438 = vmatpush.msra.mxu0 0.0
        %439 = vmatpush.msra.mxu0 0.0
        %440 = vmatpush.msra.mxu0 0.0
        %441 = vmatpush.msra.mxu0 0.0
        %442 = vmatpush.msra.mxu0 0.0
        %443 = vmatpush.msra.mxu0 0.0
        %444 = vmatpush.msra.mxu0 0.0
        %445 = vmatpush.msra.mxu0 0.0
        %446 = vmatpush.msra.mxu0 0.0
        %447 = vmatpush.msra.mxu0 0.0
        %448 = vmatpush.msra.mxu0 0.0
        %449 = vmatpush.msra.mxu0 0.0
        %450 = vmatpush.msra.mxu0 %v365
        %451 = vmatpush.msra.mxu0 %v362
        %452 = vmatmul.f32.gmra.mxu0 %v374
        %v453 = vpop.f32.mrf.mxu0
        %v454 = vadd.f32 0.0, %v453
        %455 = vdwg.mxu0
        %456 = vmatpush.msra.mxu0 0.0
        %457 = vmatpush.msra.mxu0 0.0
        %458 = vmatpush.msra.mxu0 0.0
        %459 = vmatpush.msra.mxu0 0.0
        %460 = vmatpush.msra.mxu0 0.0
        %461 = vmatpush.msra.mxu0 0.0
        %462 = vmatpush.msra.mxu0 0.0
        %463 = vmatpush.msra.mxu0 0.0
        %464 = vmatpush.msra.mxu0 0.0
        %465 = vmatpush.msra.mxu0 0.0
        %466 = vmatpush.msra.mxu0 0.0
        %467 = vmatpush.msra.mxu0 0.0
        %468 = vmatpush.msra.mxu0 0.0
        %469 = vmatpush.msra.mxu0 0.0
        %470 = vmatpush.msra.mxu0 %v371
        %471 = vmatpush.msra.mxu0 %v368
        %472 = vmatmul.f32.gmra.mxu0 %v374
        %v473 = vpop.f32.mrf.mxu0
        %v474 = vadd.f32 0.0, %v473
        %475 = vdwg.mxu0
        %v476 = vmul.f32 %v394, %v394
        %v477 = vmul.f32 %v414, %v414
        %v478 = vmul.f32 %v394, %v414
        %v479 = vsub.f32 %v434, %v476
        %v480 = vsub.f32 %v454, %v477
        %v481 = vsub.f32 %v474, %v478
        %v482 = vmul.f32 %v478, 2.0
        %v483 = vadd.f32 %v482, 0.0004
        %v484 = vmul.f32 %v481, 2.0
        %v485 = vadd.f32 %v484, 0.0036
        %v486 = vmul.f32 %v483, %v485
        %v487 = vadd.f32 %v476, %v477
        %v488 = vadd.f32 %v487, 0.0004
        %v489 = vadd.f32 %v479, %v480
        %v490 = vadd.f32 %v489, 0.0036
        %v491 = vmul.f32 %v488, %v490
        %v492 = vrcp.pop %v491
        %v493 = vmul.f32 %v491, %v492
        %v494 = vsub.f32 2.0, %v493
        %v495 = vmul.f32 %v492, %v494
        %v496 = vmul.f32 %v486, %v495
        %vm497 = vcmask 46080
        %v498 = vsel %vm497, %v496, 0.0
        %499 = vadd.xlane.f32.xlu0 %v498
        %v500 = vpop.xlane.xlu0 %499
        %v501 = vrot.slane %v500, 4
        %v502 = vadd.f32 %v500, %v501
        %v503 = vrot.slane %v502, 2
        %v504 = vadd.f32 %v502, %v503
        %v505 = vrot.slane %v504, 1
        %v506 = vadd.f32 %v504, %v505
        %s507 = vtos %v506
        %s508 = smul.f32 %s507, 0.027777778
        %v509 = vstv %s508
        %510 = vst [vmem:[%s281] sm:$0xff] %v509
        %s511 = sand.u32 %s144, 1
        %s512 = scalar_lea.sflag [#allocation4], %s511
        %s513 = sand.u32 %s144, 1
        %s514 = smul.addr %s513, 8
        %s515 = scalar_lea.vmem [#allocation7], %s514
        // Predicated region
        $region45: #{tpu_custom_call.1} parent=35 // pred_check
          %p516 = pneg %p154
        $region46: #{tpu_custom_call.1} parent=35 // pred_check_branch
          %518 = sbr.rel (%p516) target = $region48
        $region47: #{tpu_custom_call.1} parent=35 // pred_region
          %520 = vsyncadd %s512, 0
          %s521 = smul.addr %s28, 4
          %s522 = sadd.s32 %s29, %s521
          %s523 = smul.addr %s522, 8
          %s524 = scalar_lea.hbm %s4, %s523
          %s526 = sshll.u32 %s515, 4
          %s527 = int_to_ptr.vmem [resolvable:$true] %s526
          %s528 = sshll.u32 %s524, 4
          %s529 = int_to_ptr.hbm [resolvable:$true] %s528
          %531 = dma.vmem_to_hbm [thread:$0]  %s527, 128, %s529, %s512
        $region48: #{tpu_custom_call.1} parent=35 // pred_fallthru
          _
      $region36: #{tpu_custom_call.1} parent=5 // pred_fallthru
        _
      %p532 = scmp.le.s32.totalorder 2, %s19
      // Predicated region
      $region49: #{tpu_custom_call.1} parent=5 // pred_check
        %p533 = pneg %p532
      $region50: #{tpu_custom_call.1} parent=5 // pred_check_branch
        %535 = sbr.rel (%p533) target = $region52
      $region51: #{tpu_custom_call.1} parent=5 // pred_region
        %s536 = ssub.s32 %s19, 2
        // Predicated region
        $region53: #{tpu_custom_call.1} parent=51 // pred_check
          %p537 = pneg %p160
        $region54: #{tpu_custom_call.1} parent=51 // pred_check_branch
          %539 = sbr.rel (%p537) target = $region56
        $region55: #{tpu_custom_call.1} parent=51 // pred_region
          %s540 = sand.u32 %s145, 1
          %s541 = scalar_lea.sflag [#allocation4], %s540
          %s542 = sand.u32 %s145, 1
          %s543 = smul.addr %s542, 8
          %s544 = scalar_lea.vmem [#allocation7], %s543
          %546 = dma.done %s541, 128
        $region56: #{tpu_custom_call.1} parent=51 // pred_fallthru
          _
      $region52: #{tpu_custom_call.1} parent=5 // pred_fallthru
        _
    $region6: #{tpu_custom_call.1} parent=1 // loop_footer
      %s23 = sadd.s32 1, %s19
    $region7: #{tpu_custom_call.1} parent=1 // loop_footer_branch
      %18 = sbr.rel target = $region3
    $region8: #{tpu_custom_call.1} parent=1 // loop_exit
      _
    %547 = vsyncpa [#allocation3], 1
    %s548 = scalar_lea.sflag [#allocation3], 1
    %549 = vsyncpa %s548, 1
    %550 = vsyncpa [#allocation6], 1
    %s551 = scalar_lea.sflag [#allocation6], 1
    %552 = vsyncpa %s551, 1
    %553 = vsyncpa [#allocation4], 1
    %s554 = scalar_lea.sflag [#allocation4], 1
    %555 = vsyncpa %s554, 1

</llo_original>
